<compile_context>
chip_gen: v7x
topology: tpu7x:2x2x1
jax: 0.10.0
libtpu: 0.0.40
codegen_flags: <defaults>
</compile_context>

<pallas_src>
import functools

import jax
import jax.numpy as jnp
from jax import lax
from jax.experimental import pallas as pl
from jax.experimental.pallas import tpu as pltpu

_EPS = 1e-12  # F.normalize default eps


def _sce_kernel(r_ref, f_ref, o_ref, acc_ref, *, alpha, n_rows, tn,
                tiles_per_partial):
    p = pl.program_id(0)          # partial (TensorCore) index
    t = pl.program_id(1)          # reduction step within this partial

    @pl.when(t == 0)
    def _():
        acc_ref[...] = jnp.zeros_like(acc_ref)

    r = r_ref[...].astype(jnp.float32)            # (tn, D)
    f = f_ref[...].astype(jnp.float32)            # (tn, D)

    # Fused L2 normalization: cos = <r,f> / (max(|r|,eps) * max(|f|,eps))
    #   1/max(sqrt(rr), eps) == rsqrt(max(rr, eps^2))
    rr = jnp.sum(r * r, axis=-1, keepdims=True)   # (tn, 1)
    ff = jnp.sum(f * f, axis=-1, keepdims=True)   # (tn, 1)
    rf = jnp.sum(r * f, axis=-1, keepdims=True)   # (tn, 1)

    inv_r = lax.rsqrt(jnp.maximum(rr, _EPS * _EPS))
    inv_f = lax.rsqrt(jnp.maximum(ff, _EPS * _EPS))
    cos = rf * inv_r * inv_f

    x = 1.0 - cos
    if isinstance(alpha, int):
        val = x ** alpha                          # integer_pow -> VPU only
    else:
        # float alpha -> exp/log on EUP; clamp to avoid NaN when cos > 1 by a ULP
        val = jnp.maximum(x, 0.0) ** alpha

    # Mask rows past the true row count (tail block of the last tile).
    blk = p * tiles_per_partial + t
    row_ids = lax.broadcasted_iota(jnp.int32, (tn, 1), 0)
    valid = (blk * tn + row_ids) < n_rows
    acc_ref[...] += jnp.where(valid, val, 0.0)

    @pl.when(t == pl.num_programs(1) - 1)
    def _():
        # Broadcast the partial SUM over this partial's (8,128) output slab;
        # the wrapper reads element [p, 0, 0] and divides by N.
        o_ref[...] = jnp.full(o_ref.shape, jnp.sum(acc_ref[...]),
                              dtype=o_ref.dtype)


def sce_loss(real, fake, alpha=3, *, target_block_bytes=2 * 1024 * 1024):
    """Pallas implementation of SCELoss.forward. real/fake: (..., D)."""
    assert real.shape == fake.shape
    d = real.shape[-1]
    n = 1
    for s in real.shape[:-1]:
        n *= s
    r2 = real.reshape(n, d)
    f2 = fake.reshape(n, d)

    itemsize = jnp.dtype(real.dtype).itemsize
    # Row tile: ~target_block_bytes per input block, multiple of 8 rows,
    # capped so accumulator / f32 temporaries stay small, and not bigger
    # than the (row-padded) input.
    tn = max(8, (target_block_bytes // max(1, d * itemsize)) // 8 * 8)
    tn = min(tn, 1024)
    tn = min(tn, max(8, ((n + 7) // 8) * 8))

    n_tiles = pl.cdiv(n, tn)
    # 2-way split across TensorCores (v7x megacore) when it divides evenly;
    # on 1-TC chips the extra leading axis is just a trivial outer loop.
    num_partials = 2 if (n_tiles >= 2 and n_tiles % 2 == 0) else 1
    tiles_per_partial = n_tiles // num_partials

    kernel = functools.partial(
        _sce_kernel, alpha=alpha, n_rows=n, tn=tn,
        tiles_per_partial=tiles_per_partial)

    def in_map(p, t):
        return (p * tiles_per_partial + t, 0)

    out = pl.pallas_call(
        kernel,
        out_shape=jax.ShapeDtypeStruct((num_partials, 8, 128), jnp.float32),
        grid_spec=pltpu.PrefetchScalarGridSpec(
            num_scalar_prefetch=0,
            grid=(num_partials, tiles_per_partial),
            in_specs=[
                pl.BlockSpec((tn, d), in_map),
                pl.BlockSpec((tn, d), in_map),
            ],
            out_specs=pl.BlockSpec((1, 8, 128), lambda p, t: (p, 0, 0)),
            scratch_shapes=[pltpu.VMEM((tn, 1), jnp.float32)],
        ),
        compiler_params=pltpu.CompilerParams(
            # leading axis split across cores; reduction axis sequential
            dimension_semantics=("parallel", "arbitrary"),
            vmem_limit_bytes=48 * 1024 * 1024,
        ),
    )(r2, f2)

    # Each partial wrote its partial sum (broadcast over its slab).
    return out[:, 0, 0].sum() / n


def _sce_loss_ref(real, fake, alpha=3):
    r = real / jnp.maximum(jnp.linalg.norm(real, axis=-1, keepdims=True), _EPS)
    f = fake / jnp.maximum(jnp.linalg.norm(fake, axis=-1, keepdims=True), _EPS)
    loss = (1.0 - jnp.sum(r * f, axis=-1)) ** alpha
    return jnp.mean(loss)


if __name__ == "__main__":
    key = jax.random.PRNGKey(0)
    k1, k2 = jax.random.split(key)
    # small shapes: batch=2, seq=8, hidden=32  -> flattened to (16, 32)
    real = jax.random.normal(k1, (2, 8, 32), dtype=jnp.float32)
    fake = jax.random.normal(k2, (2, 8, 32), dtype=jnp.float32)

    out = sce_loss(real, fake, alpha=3)
    out = jax.block_until_ready(out)

    ref = _sce_loss_ref(real, fake, alpha=3)
    assert jnp.allclose(out, ref, rtol=1e-5, atol=1e-6), (out, ref)
    print("KERNEL_OK")
</pallas_src>

<mosaic_0001>
module attributes {stable_mosaic.version = 11 : i64} {
  func.func @_sce_kernel(%arg0: i32, %arg1: i32, %arg2: memref<16x32xf32, #tpu.memory_space<vmem>>, %arg3: memref<16x32xf32, #tpu.memory_space<vmem>>, %arg4: memref<1x8x128xf32, #tpu.memory_space<vmem>>, %arg5: memref<16x1xf32, #tpu.memory_space<vmem>>) attributes {dimension_semantics = [#tpu.dimension_semantics<parallel>, #tpu.dimension_semantics<arbitrary>], iteration_bounds = array<i64: 1, 1>, scalar_prefetch = 0 : i64, scratch_operands = 1 : i64, tpu.core_type = #tpu.core_type<tc>, window_params = [{transform_indices = @transform_0, window_bounds = array<i64: 16, 32>}, {transform_indices = @transform_1, window_bounds = array<i64: 16, 32>}, {transform_indices = @transform_2, window_bounds = array<i64: 1, 8, 128>}]} {
    %c0_i32 = arith.constant 0 : i32
    %0 = arith.cmpi eq, %arg1, %c0_i32 : i32
    %1 = arith.extui %0 : i1 to i32
    %c0_i32_0 = arith.constant 0 : i32
    %2 = arith.cmpi ne, %1, %c0_i32_0 : i32
    scf.if %2 {
      %cst_17 = arith.constant 0.000000e+00 : f32
      %42 = vector.broadcast %cst_17 : f32 to vector<16x1xf32>
      %c0_18 = arith.constant 0 : index
      %c0_19 = arith.constant 0 : index
      %43 = vector.load %arg5[%c0_18, %c0_19] : memref<16x1xf32, #tpu.memory_space<vmem>>, vector<16x1xf32>
      tpu.vector_store %arg5[%c0_18, %c0_19], %42 {strides = array<i32>} : memref<16x1xf32, #tpu.memory_space<vmem>>, vector<16x1xf32>,
    } else {
    }
    %c0 = arith.constant 0 : index
    %c0_1 = arith.constant 0 : index
    %3 = vector.load %arg2[%c0, %c0_1] : memref<16x32xf32, #tpu.memory_space<vmem>>, vector<16x32xf32>
    %c0_2 = arith.constant 0 : index
    %c0_3 = arith.constant 0 : index
    %4 = vector.load %arg3[%c0_2, %c0_3] : memref<16x32xf32, #tpu.memory_space<vmem>>, vector<16x32xf32>
    %5 = arith.mulf %3, %3 : vector<16x32xf32>
    %cst = arith.constant dense<0.000000e+00> : vector<16xf32>
    %6 = vector.multi_reduction <add>, %5, %cst [1] : vector<16x32xf32> to vector<16xf32>
    %7 = vector.shape_cast %6 : vector<16xf32> to vector<16x1xf32>
    %8 = arith.mulf %4, %4 : vector<16x32xf32>
    %cst_4 = arith.constant dense<0.000000e+00> : vector<16xf32>
    %9 = vector.multi_reduction <add>, %8, %cst_4 [1] : vector<16x32xf32> to vector<16xf32>
    %10 = vector.shape_cast %9 : vector<16xf32> to vector<16x1xf32>
    %11 = arith.mulf %3, %4 : vector<16x32xf32>
    %cst_5 = arith.constant dense<0.000000e+00> : vector<16xf32>
    %12 = vector.multi_reduction <add>, %11, %cst_5 [1] : vector<16x32xf32> to vector<16xf32>
    %13 = vector.shape_cast %12 : vector<16xf32> to vector<16x1xf32>
    %cst_6 = arith.constant 1.000000e-24 : f32
    %14 = vector.broadcast %cst_6 : f32 to vector<16x1xf32>
    %15 = arith.maximumf %7, %14 : vector<16x1xf32>
    %16 = math.rsqrt %15 : vector<16x1xf32>
    %cst_7 = arith.constant 1.000000e-24 : f32
    %17 = vector.broadcast %cst_7 : f32 to vector<16x1xf32>
    %18 = arith.maximumf %10, %17 : vector<16x1xf32>
    %19 = math.rsqrt %18 : vector<16x1xf32>
    %20 = arith.mulf %13, %16 : vector<16x1xf32>
    %21 = arith.mulf %20, %19 : vector<16x1xf32>
    %cst_8 = arith.constant 1.000000e+00 : f32
    %22 = vector.broadcast %cst_8 : f32 to vector<16x1xf32>
    %23 = arith.subf %22, %21 : vector<16x1xf32>
    %24 = arith.mulf %23, %23 : vector<16x1xf32>
    %25 = arith.mulf %23, %24 : vector<16x1xf32>
    %c1_i32 = arith.constant 1 : i32
    %26 = arith.muli %arg0, %c1_i32 : i32
    %27 = arith.addi %26, %arg1 : i32
    %28 = tpu.iota {dimensions = array<i32: 0>} : vector<16x1xi32>
    %c16_i32 = arith.constant 16 : i32
    %29 = arith.muli %27, %c16_i32 : i32
    %30 = vector.broadcast %29 : i32 to vector<16x1xi32>
    %31 = arith.addi %30, %28 : vector<16x1xi32>
    %c16_i32_9 = arith.constant 16 : i32
    %32 = vector.broadcast %c16_i32_9 : i32 to vector<16x1xi32>
    %33 = arith.cmpi slt, %31, %32 : vector<16x1xi32>
    %c0_10 = arith.constant 0 : index
    %c0_11 = arith.constant 0 : index
    %34 = vector.load %arg5[%c0_10, %c0_11] : memref<16x1xf32, #tpu.memory_space<vmem>>, vector<16x1xf32>
    %cst_12 = arith.constant 0.000000e+00 : f32
    %35 = vector.broadcast %cst_12 : f32 to vector<16x1xf32>
    %36 = arith.select %33, %25, %35 : vector<16x1xi1>, vector<16x1xf32>
    %37 = arith.addf %34, %36 : vector<16x1xf32>
    %c0_13 = arith.constant 0 : index
    %c0_14 = arith.constant 0 : index
    %38 = vector.load %arg5[%c0_13, %c0_14] : memref<16x1xf32, #tpu.memory_space<vmem>>, vector<16x1xf32>
    tpu.vector_store %arg5[%c0_13, %c0_14], %37 {strides = array<i32>} : memref<16x1xf32, #tpu.memory_space<vmem>>, vector<16x1xf32>,
    %c0_i32_15 = arith.constant 0 : i32
    %39 = arith.cmpi eq, %arg1, %c0_i32_15 : i32
    %40 = arith.extui %39 : i1 to i32
    %c0_i32_16 = arith.constant 0 : i32
    %41 = arith.cmpi ne, %40, %c0_i32_16 : i32
    scf.if %41 {
      %c0_17 = arith.constant 0 : index
      %c0_18 = arith.constant 0 : index
      %42 = vector.load %arg5[%c0_17, %c0_18] : memref<16x1xf32, #tpu.memory_space<vmem>>, vector<16x1xf32>
      %43 = vector.shape_cast %42 : vector<16x1xf32> to vector<1x16x1xf32>
      %cst_19 = arith.constant dense<0.000000e+00> : vector<1xf32>
      %44 = vector.multi_reduction <add>, %43, %cst_19 [1, 2] : vector<1x16x1xf32> to vector<1xf32>
      %45 = vector.shape_cast %44 : vector<1xf32> to vector<1x1x1xf32>
      %46 = vector.extract %45[0, 0, 0] : f32 from vector<1x1x1xf32>
      %47 = vector.broadcast %46 : f32 to vector<1x8x128xf32>
      %c0_20 = arith.constant 0 : index
      %c0_21 = arith.constant 0 : index
      %c0_22 = arith.constant 0 : index
      %48 = vector.load %arg4[%c0_20, %c0_21, %c0_22] : memref<1x8x128xf32, #tpu.memory_space<vmem>>, vector<1x8x128xf32>
      tpu.vector_store %arg4[%c0_20, %c0_21, %c0_22], %47 {strides = array<i32>} : memref<1x8x128xf32, #tpu.memory_space<vmem>>, vector<1x8x128xf32>,
    } else {
    }
    return
  }
  func.func @transform_0(%arg0: i32, %arg1: i32) -> (i32, i32) {
    %c1_i32 = arith.constant 1 : i32
    %0 = arith.muli %arg0, %c1_i32 : i32
    %1 = arith.addi %0, %arg1 : i32
    %c0_i32 = arith.constant 0 : i32
    %c0_i32_0 = arith.constant 0 : i32
    return %1, %c0_i32 : i32, i32
  }
  func.func @transform_1(%arg0: i32, %arg1: i32) -> (i32, i32) {
    %c1_i32 = arith.constant 1 : i32
    %0 = arith.muli %arg0, %c1_i32 : i32
    %1 = arith.addi %0, %arg1 : i32
    %c0_i32 = arith.constant 0 : i32
    %c0_i32_0 = arith.constant 0 : i32
    return %1, %c0_i32 : i32, i32
  }
  func.func @transform_2(%arg0: i32, %arg1: i32) -> (i32, i32, i32) {
    %c0_i32 = arith.constant 0 : i32
    %c0_i32_0 = arith.constant 0 : i32
    %c0_i32_1 = arith.constant 0 : i32
    return %arg0, %c0_i32, %c0_i32_0 : i32, i32, i32
  }
}

</mosaic_0001>

<llo_original>
// kernel: tpu_custom_call.1
$region0: #{tpu_custom_call.1}
  #allocation0 [shape = 'u32[]', space=smem, size = 0x4, offset = 0x4, fixed_abs, tag = 'smem constant byte address 0x4 - core index']
  #allocation1 [shape = 'u32[144,128]{1,0:T(1,128)}', space=vmem, size = 0x12000, scoped, tag = 'internal scratch']
  #allocation2 [shape = 'f32[16,1]{1,0:T(8,128)}', space=vmem, size = 0x2000, scoped, tag = 'scratch operand']
  %s0 = inlined_call_operand.hbm [shape: f32[16,32], index: 0, kind: input, shape index: {}]
  %s1 = inlined_call_operand.hbm [shape: f32[16,32], index: 1, kind: input, shape index: {}]
  %s2 = inlined_call_operand.hbm [shape: f32[1,8,128], index: 2, kind: output, shape index: {}]
  %s3 = sld [smem:[#allocation0]]
  $region34: #{tpu_custom_call.1} parent=0
    _
  %s5 = ssub.s32 1, %s3
  %s6 = scalar_select 0, %s5, %s3
  $region1: #{tpu_custom_call.1} parent=0
    #allocation3 [shape = 'u8[8192]{0}', space=vmem, size = 0x2000, scoped, tag = 'input window, operand 0, single buffered']
    #allocation4 [shape = 's32[1]{0}', space=sflag, size = 0x4, scoped, tag = 'scoped memory for tpu_custom_call.1']
    #allocation5 [shape = 's32[1]{0}', space=sflag, size = 0x4, scoped, tag = 'scoped memory for tpu_custom_call.1']
    #allocation6 [shape = 'u8[8192]{0}', space=vmem, size = 0x2000, scoped, tag = 'input window, operand 1, single buffered']
    #allocation7 [shape = 's32[1]{0}', space=sflag, size = 0x4, scoped, tag = 'scoped memory for tpu_custom_call.1']
    #allocation8 [shape = 'u8[4096]{0}', space=vmem, size = 0x1000, scoped, tag = 'output window, operand 0, single buffered']
    %7 = vsyncpa [#allocation4], 0
    %8 = vsyncpa [#allocation7], 0
    %9 = vsyncpa [#allocation5], 0
    // Predicated region
    $region2: #{tpu_custom_call.1} parent=1 // pred_check
      _
    $region3: #{tpu_custom_call.1} parent=1 // pred_check_branch
      %11 = sbr.rel (0) target = $region5
    $region4: #{tpu_custom_call.1} parent=1 // pred_region
      %s12 = sadd.s32 0, 0
      %s13 = smul.u32 2, %s12
      %s15 = ssub.s32 256, 256
      %16 = vsyncadd [#allocation4], %s15
      %s17 = smul.addr %s13, 128
      %s18 = scalar_lea.hbm %s0, %s17
      %s19 = sshll.u32 [#allocation3], 4
      %s20 = int_to_ptr.vmem [resolvable:$true] %s19
      %25 = dma.hbm_to_vmem [thread:$0]  %s18, 256, %s20, [#allocation4], 128, 128, 8
    $region5: #{tpu_custom_call.1} parent=1 // pred_fallthru
      _
    // Predicated region
    $region6: #{tpu_custom_call.1} parent=1 // pred_check
      _
    $region7: #{tpu_custom_call.1} parent=1 // pred_check_branch
      %27 = sbr.rel (0) target = $region9
    $region8: #{tpu_custom_call.1} parent=1 // pred_region
      %s28 = sadd.s32 0, 0
      %s29 = smul.u32 2, %s28
      %s31 = ssub.s32 256, 256
      %32 = vsyncadd [#allocation7], %s31
      %s33 = smul.addr %s29, 128
      %s34 = scalar_lea.hbm %s1, %s33
      %s35 = sshll.u32 [#allocation6], 4
      %s36 = int_to_ptr.vmem [resolvable:$true] %s35
      %41 = dma.hbm_to_vmem [thread:$0]  %s34, 256, %s36, [#allocation7], 128, 128, 8
    $region9: #{tpu_custom_call.1} parent=1 // pred_fallthru
      _
    // Predicated region
    $region10: #{tpu_custom_call.1} parent=1 // pred_check
      _
    $region11: #{tpu_custom_call.1} parent=1 // pred_check_branch
      %43 = sbr.rel (0) target = $region13
    $region12: #{tpu_custom_call.1} parent=1 // pred_region
      %44 = dma.done [#allocation4], 256
    $region13: #{tpu_custom_call.1} parent=1 // pred_fallthru
      _
    // Predicated region
    $region14: #{tpu_custom_call.1} parent=1 // pred_check
      _
    $region15: #{tpu_custom_call.1} parent=1 // pred_check_branch
      %46 = sbr.rel (0) target = $region17
    $region16: #{tpu_custom_call.1} parent=1 // pred_region
      %47 = dma.done [#allocation7], 256
    $region17: #{tpu_custom_call.1} parent=1 // pred_fallthru
      _
    %s48 = sadd.s32 0, 0
    %s49 = smul.u32 2, %s48
    %s50 = sadd.s32 0, 0
    %s51 = smul.u32 2, %s50
    %p52 = scmp.eq.s32.totalorder 0, 0
    // Predicated region
    $region18: #{tpu_custom_call.1} parent=1 // pred_check
      %p53 = pneg %p52
    $region19: #{tpu_custom_call.1} parent=1 // pred_check_branch
      %55 = sbr.rel (%p53) target = $region21
    $region20: #{tpu_custom_call.1} parent=1 // pred_region
      %vm56 = vcmask 7168
      %57 = vst.msk [vmem:[#allocation2] sm:$0xff] %vm56, 0.0
      %58 = vst.msk [vmem:[#allocation2 + $0x8] sm:$0xff] %vm56, 0.0
    $region21: #{tpu_custom_call.1} parent=1 // pred_fallthru
      _
    %v59 = vld [vmem:[#allocation3] sm:$0xff]
    %v60 = vld [vmem:[#allocation3 + $0x8] sm:$0xff]
    %v61 = vld [vmem:[#allocation6] sm:$0xff]
    %v62 = vld [vmem:[#allocation6 + $0x8] sm:$0xff]
    %v63 = vmul.f32 %v59, %v59
    %v64 = vmul.f32 %v60, %v60
    %vm65 = vcmask 261120
    %v66 = vsel %vm65, %v63, 0.0
    %67 = vadd.xlane.f32.xlu0 %v66
    %v68 = vpop.xlane.xlu0 %67
    %v69 = vsel %vm65, %v64, 0.0
    %70 = vadd.xlane.f32.xlu0 %v69
    %v71 = vpop.xlane.xlu0 %70
    %v72 = vmul.f32 %v61, %v61
    %v73 = vmul.f32 %v62, %v62
    %v74 = vsel %vm65, %v72, 0.0
    %75 = vadd.xlane.f32.xlu0 %v74
    %v76 = vpop.xlane.xlu0 %75
    %v77 = vsel %vm65, %v73, 0.0
    %78 = vadd.xlane.f32.xlu0 %v77
    %v79 = vpop.xlane.xlu0 %78
    %v80 = vmul.f32 %v59, %v61
    %v81 = vmul.f32 %v60, %v62
    %v82 = vsel %vm65, %v80, 0.0
    %83 = vadd.xlane.f32.xlu0 %v82
    %v84 = vpop.xlane.xlu0 %83
    %v85 = vsel %vm65, %v81, 0.0
    %86 = vadd.xlane.f32.xlu0 %v85
    %v87 = vpop.xlane.xlu0 %86
    %v88 = vmax.f32 %v68, 1e-24
    %v89 = vmax.f32 %v71, 1e-24
    %v90 = vrsqrt.pop %v88
    %v91 = vrsqrt.pop %v89
    %v92 = vmax.f32 %v76, 1e-24
    %v93 = vmax.f32 %v79, 1e-24
    %v94 = vrsqrt.pop %v92
    %v95 = vrsqrt.pop %v93
    %v96 = vmul.f32 %v84, %v90
    %v97 = vmul.f32 %v87, %v91
    %v98 = vmul.f32 %v96, %v94
    %v99 = vmul.f32 %v97, %v95
    %v100 = vsub.f32 1.0, %v98
    %v101 = vsub.f32 1.0, %v99
    %v102 = vmul.f32 %v100, %v100
    %v103 = vmul.f32 %v101, %v101
    %v104 = vmul.f32 %v100, %v102
    %v105 = vmul.f32 %v101, %v103
    %s106 = sadd.s32 0, 0
    %v107 = vlaneseq
    %v108 = vshrl.u32 %v107, 7
    %v109 = vadd.s32 %v108, 8
    %s110 = smul.u32 %s106, 16
    %v111 = vstv %s110
    %v112 = vadd.s32 %v111, %v108
    %v113 = vadd.s32 %v111, %v109
    %vm114 = vcmp.lt.s32.totalorder %v112, 16
    %vm115 = vcmp.lt.s32.totalorder %v113, 16
    %v116 = vld [vmem:[#allocation2] sm:$0xff]
    %v117 = vld [vmem:[#allocation2 + $0x8] sm:$0xff]
    %v118 = vsel %vm114, %v104, 0.0
    %v119 = vsel %vm115, %v105, 0.0
    %v120 = vadd.f32 %v116, %v118
    %v121 = vadd.f32 %v117, %v119
    %vm122 = vcmask 7168
    %123 = vst.msk [vmem:[#allocation2] sm:$0xff] %vm122, %v120
    %124 = vst.msk [vmem:[#allocation2 + $0x8] sm:$0xff] %vm122, %v121
    // Predicated region
    $region22: #{tpu_custom_call.1} parent=1 // pred_check
      %p125 = pneg %p52
    $region23: #{tpu_custom_call.1} parent=1 // pred_check_branch
      %127 = sbr.rel (%p125) target = $region25
    $region24: #{tpu_custom_call.1} parent=1 // pred_region
      %v128 = vld [vmem:[#allocation2] sm:$0xff]
      %v129 = vld [vmem:[#allocation2 + $0x8] sm:$0xff]
      %v130 = vsel %vm122, %v128, 0.0
      %v131 = vsel %vm122, %v129, 0.0
      %v132 = vadd.f32 %v130, %v131
      %133 = vadd.xlane.f32.xlu0 %v132
      %v134 = vpop.xlane.xlu0 %133
      %v135 = vrot.slane %v134, 4
      %v136 = vadd.f32 %v134, %v135
      %v137 = vrot.slane %v136, 2
      %v138 = vadd.f32 %v136, %v137
      %v139 = vrot.slane %v138, 1
      %v140 = vadd.f32 %v138, %v139
      %s141 = vtos %v140
      %v142 = vstv %s141
      %143 = vst [vmem:[#allocation8] sm:$0xff] %v142
    $region25: #{tpu_custom_call.1} parent=1 // pred_fallthru
      _
    // Predicated region
    $region26: #{tpu_custom_call.1} parent=1 // pred_check
      _
    $region27: #{tpu_custom_call.1} parent=1 // pred_check_branch
      %145 = sbr.rel (0) target = $region29
    $region28: #{tpu_custom_call.1} parent=1 // pred_region
      %s147 = ssub.s32 128, 128
      %148 = vsyncadd [#allocation5], %s147
      %s150 = sshll.u32 [#allocation8], 4
      %s151 = int_to_ptr.vmem [resolvable:$true] %s150
      %153 = dma.vmem_to_hbm [thread:$0]  %s151, 128, %s2, [#allocation5]
    $region29: #{tpu_custom_call.1} parent=1 // pred_fallthru
      _
    // Predicated region
    $region30: #{tpu_custom_call.1} parent=1 // pred_check
      _
    $region31: #{tpu_custom_call.1} parent=1 // pred_check_branch
      %155 = sbr.rel (0) target = $region33
    $region32: #{tpu_custom_call.1} parent=1 // pred_region
      %156 = dma.done [#allocation5], 128
    $region33: #{tpu_custom_call.1} parent=1 // pred_fallthru
      _
    %157 = vsyncpa [#allocation4], 1
    %158 = vsyncpa [#allocation7], 1
    %159 = vsyncpa [#allocation5], 1

</llo_original>
